<compile_context>
chip_gen: v7x
topology: tpu7x:2x2x1
jax: 0.10.0
libtpu: 0.0.40
codegen_flags: <defaults>
</compile_context>

<pallas_src>
import math

import jax
import jax.numpy as jnp
from jax.experimental import pallas as pl
from jax.experimental.pallas import tpu as pltpu


def _pointwise_kernel(x1_ref, x2_ref, bias_ref, o_ref):
    # Streaming elementwise: out = x1 * x2 + bias.  Inputs arrive in native
    # dtypes; casting here rides spare VPU slots (kernel is HBM/vst bound).
    dt = o_ref.dtype
    o_ref[...] = (x1_ref[...].astype(dt) * x2_ref[...].astype(dt)
                  + bias_ref[...].astype(dt))


def _sublanes(dtype):
    # f32 -> 8, bf16/f16 -> 16, int8/fp8 -> 32 (packed sublanes).
    return max(8, 32 // jnp.dtype(dtype).itemsize)


def pointwise_layer(x1, x2, bias, *, row_tile=None,
                    target_block_bytes=4 * 1024 * 1024,
                    max_pack_lanes=1024):
    """Compute x1 * x2 + bias (bias broadcast over last dim) with Pallas.

    x1, x2: arrays of shape [..., D] (dtypes may differ; promoted in-kernel)
    bias:   array of shape [D]
    """
    assert x1.shape == x2.shape
    D = x1.shape[-1]
    assert bias.shape == (D,)

    out_dtype = jnp.result_type(x1.dtype, x2.dtype, bias.dtype)
    orig_shape = x1.shape
    rows = 1
    for s in orig_shape[:-1]:
        rows *= s

    x1_2d = x1.reshape(rows, D)
    x2_2d = x2.reshape(rows, D)
    bias_row = bias.reshape(1, D)

    # --- Lane-dense repack (pure reshape, never a padding copy) -------------
    lane_w = D
    n_rows = rows
    if D % 128 != 0:
        lcm = (D * 128) // math.gcd(D, 128)
        if lcm <= max_pack_lanes and rows * D > 0 and (rows * D) % lcm == 0:
            lane_w = lcm
            pack = lane_w // D
            n_rows = (rows * D) // lane_w
            x1_2d = x1_2d.reshape(n_rows, lane_w)
            x2_2d = x2_2d.reshape(n_rows, lane_w)
            # lane l of a packed row holds original feature l % D.
            bias_row = jnp.tile(bias, pack).reshape(1, lane_w)

    # --- Tile-size selection -------------------------------------------------
    isz1 = jnp.dtype(x1.dtype).itemsize
    isz2 = jnp.dtype(x2.dtype).itemsize
    iszo = jnp.dtype(out_dtype).itemsize
    isz_max = max(isz1, isz2, iszo)
    sub = max(_sublanes(x1.dtype), _sublanes(x2.dtype), _sublanes(out_dtype))

    # Lane tiling (2-D grid) only possible when lane_w is a multiple of 128;
    # otherwise the lane block must equal the full dim.
    lane_tile = lane_w
    if lane_w > 128 and lane_w % 128 == 0:
        max_lanes = (target_block_bytes // (sub * isz_max)) // 128 * 128
        lane_tile = int(min(lane_w, max(128, max_lanes)))
    grid_lanes = pl.cdiv(lane_w, lane_tile)

    total_stream_bytes = n_rows * lane_w * (isz1 + isz2 + iszo)

    if row_tile is None:
        row_tile = max(1, target_block_bytes // (lane_tile * isz_max))
        # Keep >=4 row blocks for non-trivial sizes: a single grid step
        # serializes DMA-in -> compute -> DMA-out and defeats v7x dual-TC
        # sharding; exposed DMA hurts most on v5e's low HBM bandwidth.
        if total_stream_bytes > (1 << 20):
            row_tile = min(row_tile, pl.cdiv(n_rows, 4))
    row_tile = int(row_tile)
    if row_tile >= n_rows:
        row_tile = n_rows                       # full-extent block: always legal
    else:
        row_tile = max(sub, (row_tile // sub) * sub)
    grid_rows = pl.cdiv(n_rows, row_tile)

    # VMEM budget: 2 pipeline buffers x (x1 + x2 + out blocks) + bias + margin.
    # Cap at 48 MiB so it always fits v7x's 64 MiB-per-TC physical VMEM.
    block_bytes = row_tile * lane_tile * (isz1 + isz2 + iszo)
    bias_bytes = lane_tile * jnp.dtype(bias.dtype).itemsize
    vmem_limit = int(min(48 << 20,
                         max(32 << 20, 2 * (block_bytes + bias_bytes) + (4 << 20))))

    out_2d = pl.pallas_call(
        _pointwise_kernel,
        out_shape=jax.ShapeDtypeStruct((n_rows, lane_w), out_dtype),
        grid_spec=pltpu.PrefetchScalarGridSpec(
            num_scalar_prefetch=0,
            grid=(grid_rows, grid_lanes),
            in_specs=[
                pl.BlockSpec((row_tile, lane_tile), lambda i, j: (i, j)),
                pl.BlockSpec((row_tile, lane_tile), lambda i, j: (i, j)),
                # Constant row index keeps the bias block resident; do NOT
                # re-broadcast it per step inside the kernel.
                pl.BlockSpec((1, lane_tile), lambda i, j: (0, j)),
            ],
            out_specs=pl.BlockSpec((row_tile, lane_tile), lambda i, j: (i, j)),
        ),
        compiler_params=pltpu.CompilerParams(
            dimension_semantics=("parallel", "parallel"),
            vmem_limit_bytes=vmem_limit,
        ),
    )(x1_2d, x2_2d, bias_row)

    # Pure reshape back (packing was exact, grid ragged blocks were masked).
    return out_2d.reshape(orig_shape)


def init_pointwise_bias(key, num_outputs, dtype=jnp.float32):
    # Matches torch.zeros(num_outputs).uniform_(-sqrt(n), sqrt(n))
    bound = math.sqrt(num_outputs)
    return jax.random.uniform(
        key, (num_outputs,), dtype=dtype, minval=-bound, maxval=bound
    )


if __name__ == "__main__":
    key = jax.random.PRNGKey(0)
    keys = jax.random.split(key, 16)

    # Case 1: module-sized example (lane-dense repack, D=32 -> 128 lanes).
    B, S, D = 2, 8, 32
    x1 = jax.random.normal(keys[0], (B, S, D), dtype=jnp.float32)
    x2 = jax.random.normal(keys[1], (B, S, D), dtype=jnp.float32)
    bias = init_pointwise_bias(keys[2], D)
    out = jax.block_until_ready(pointwise_layer(x1, x2, bias))
    ref = x1 * x2 + bias
    assert out.shape == (B, S, D)
    assert jnp.allclose(out, ref, atol=1e-6, rtol=1e-6)

    # Case 2: non-divisible rows + explicit small tile -> ragged last block,
    # no padding copy, Pallas boundary masking (no repack: 51*32 % 128 != 0).
    B, S, D = 3, 17, 32
    x1 = jax.random.normal(keys[3], (B, S, D), dtype=jnp.float32)
    x2 = jax.random.normal(keys[4], (B, S, D), dtype=jnp.float32)
    bias = init_pointwise_bias(keys[5], D)
    out = jax.block_until_ready(pointwise_layer(x1, x2, bias, row_tile=8))
    ref = x1 * x2 + bias
    assert out.shape == (B, S, D)
    assert jnp.allclose(out, ref, atol=1e-6, rtol=1e-6)

    # Case 3: lane-dense D (no repack), multi-step row grid.
    B, S, D = 2, 8, 128
    x1 = jax.random.normal(keys[6], (B, S, D), dtype=jnp.float32)
    x2 = jax.random.normal(keys[7], (B, S, D), dtype=jnp.float32)
    bias = init_pointwise_bias(keys[8], D)
    out = jax.block_until_ready(pointwise_layer(x1, x2, bias, row_tile=8))
    ref = x1 * x2 + bias
    assert out.shape == (B, S, D)
    assert jnp.allclose(out, ref, atol=1e-6, rtol=1e-6)

    # Case 4: awkward D=48 -> generalized repack to lcm(48,128)=384 lanes,
    # mixed dtypes (bf16 x f32) with in-kernel promotion.
    B, S, D = 4, 16, 48
    x1 = jax.random.normal(keys[9], (B, S, D), dtype=jnp.bfloat16)
    x2 = jax.random.normal(keys[10], (B, S, D), dtype=jnp.float32)
    bias = init_pointwise_bias(keys[11], D)
    out = jax.block_until_ready(pointwise_layer(x1, x2, bias))
    ref = x1 * x2 + bias
    assert out.shape == (B, S, D)
    assert out.dtype == jnp.float32
    assert jnp.allclose(out, ref, atol=1e-5, rtol=1e-5)

    # Case 5: mid-size call -> auto tiling forces >=4 row blocks (pipelined,
    # megacore-shardable path).
    B, S, D = 4, 256, 256
    x1 = jax.random.normal(keys[12], (B, S, D), dtype=jnp.float32)
    x2 = jax.random.normal(keys[13], (B, S, D), dtype=jnp.float32)
    bias = init_pointwise_bias(keys[14], D)
    out = jax.block_until_ready(pointwise_layer(x1, x2, bias))
    ref = x1 * x2 + bias
    assert out.shape == (B, S, D)
    assert jnp.allclose(out, ref, atol=1e-6, rtol=1e-6)

    print("KERNEL_OK")
</pallas_src>

<mosaic_0001>
module attributes {stable_mosaic.version = 11 : i64} {
  func.func @_pointwise_kernel(%arg0: i32, %arg1: i32, %arg2: memref<4x128xf32, #tpu.memory_space<vmem>>, %arg3: memref<4x128xf32, #tpu.memory_space<vmem>>, %arg4: memref<1x128xf32, #tpu.memory_space<vmem>>, %arg5: memref<4x128xf32, #tpu.memory_space<vmem>>) attributes {dimension_semantics = [#tpu.dimension_semantics<parallel>, #tpu.dimension_semantics<parallel>], iteration_bounds = array<i64: 1, 1>, scalar_prefetch = 0 : i64, scratch_operands = 0 : i64, tpu.core_type = #tpu.core_type<tc>, window_params = [{transform_indices = @transform_0, window_bounds = array<i64: 4, 128>}, {transform_indices = @transform_1, window_bounds = array<i64: 4, 128>}, {transform_indices = @transform_2, window_bounds = array<i64: 1, 128>}, {transform_indices = @transform_3, window_bounds = array<i64: 4, 128>}]} {
    %c0 = arith.constant 0 : index
    %c0_0 = arith.constant 0 : index
    %0 = vector.load %arg2[%c0, %c0_0] : memref<4x128xf32, #tpu.memory_space<vmem>>, vector<4x128xf32>
    %c0_1 = arith.constant 0 : index
    %c0_2 = arith.constant 0 : index
    %1 = vector.load %arg3[%c0_1, %c0_2] : memref<4x128xf32, #tpu.memory_space<vmem>>, vector<4x128xf32>
    %2 = arith.mulf %0, %1 : vector<4x128xf32>
    %c0_3 = arith.constant 0 : index
    %c0_4 = arith.constant 0 : index
    %3 = vector.load %arg4[%c0_3, %c0_4] : memref<1x128xf32, #tpu.memory_space<vmem>>, vector<1x128xf32>
    %4 = vector.broadcast %3 : vector<1x128xf32> to vector<4x128xf32>
    %5 = arith.addf %2, %4 : vector<4x128xf32>
    %c0_5 = arith.constant 0 : index
    %c0_6 = arith.constant 0 : index
    %6 = vector.load %arg5[%c0_5, %c0_6] : memref<4x128xf32, #tpu.memory_space<vmem>>, vector<4x128xf32>
    tpu.vector_store %arg5[%c0_5, %c0_6], %5 {strides = array<i32>} : memref<4x128xf32, #tpu.memory_space<vmem>>, vector<4x128xf32>,
    return
  }
  func.func @transform_0(%arg0: i32, %arg1: i32) -> (i32, i32) {
    %c0_i32 = arith.constant 0 : i32
    return %arg0, %arg1 : i32, i32
  }
  func.func @transform_1(%arg0: i32, %arg1: i32) -> (i32, i32) {
    %c0_i32 = arith.constant 0 : i32
    return %arg0, %arg1 : i32, i32
  }
  func.func @transform_2(%arg0: i32, %arg1: i32) -> (i32, i32) {
    %c0_i32 = arith.constant 0 : i32
    %c0_i32_0 = arith.constant 0 : i32
    return %c0_i32, %arg1 : i32, i32
  }
  func.func @transform_3(%arg0: i32, %arg1: i32) -> (i32, i32) {
    %c0_i32 = arith.constant 0 : i32
    return %arg0, %arg1 : i32, i32
  }
}

</mosaic_0001>

<llo_original>
// kernel: tpu_custom_call.1
$region0: #{tpu_custom_call.1}
  #allocation0 [shape = 'u32[]', space=smem, size = 0x4, offset = 0x4, fixed_abs, tag = 'smem constant byte address 0x4 - core index']
  #allocation1 [shape = 'u32[144,128]{1,0:T(1,128)}', space=vmem, size = 0x12000, scoped, tag = 'internal scratch']
  %s0 = inlined_call_operand.hbm [shape: f32[4,128], index: 0, kind: input, shape index: {}]
  %s1 = inlined_call_operand.hbm [shape: f32[4,128], index: 1, kind: input, shape index: {}]
  %s2 = inlined_call_operand.vmem [shape: f32[1,128], index: 2, kind: input, shape index: {}]
  %s3 = inlined_call_operand.hbm [shape: f32[4,128], index: 3, kind: output, shape index: {}]
  %s4 = sld [smem:[#allocation0]]
  $region30: #{tpu_custom_call.1} parent=0
    _
  %s6 = ssub.s32 1, %s4
  %s7 = scalar_select 0, %s6, %s4
  $region1: #{tpu_custom_call.1} parent=0
    #allocation2 [shape = 'u8[2048]{0}', space=vmem, size = 0x800, scoped, tag = 'input window, operand 0, single buffered']
    #allocation3 [shape = 's32[1]{0}', space=sflag, size = 0x4, scoped, tag = 'scoped memory for tpu_custom_call.1']
    #allocation4 [shape = 's32[1]{0}', space=sflag, size = 0x4, scoped, tag = 'scoped memory for tpu_custom_call.1']
    #allocation5 [shape = 'u8[2048]{0}', space=vmem, size = 0x800, scoped, tag = 'input window, operand 1, single buffered']
    #allocation6 [shape = 's32[1]{0}', space=sflag, size = 0x4, scoped, tag = 'scoped memory for tpu_custom_call.1']
    #allocation7 [shape = 'u8[2048]{0}', space=vmem, size = 0x800, scoped, tag = 'output window, operand 0, single buffered']
    %8 = vsyncpa [#allocation3], 0
    %9 = vsyncpa [#allocation6], 0
    %10 = vsyncpa [#allocation4], 0
    // Predicated region
    $region2: #{tpu_custom_call.1} parent=1 // pred_check
      _
    $region3: #{tpu_custom_call.1} parent=1 // pred_check_branch
      %12 = sbr.rel (0) target = $region5
    $region4: #{tpu_custom_call.1} parent=1 // pred_region
      %s14 = ssub.s32 64, 64
      %15 = vsyncadd [#allocation3], %s14
      %s17 = sshll.u32 [#allocation2], 4
      %s18 = int_to_ptr.vmem [resolvable:$true] %s17
      %20 = dma.hbm_to_vmem [thread:$0]  %s0, 64, %s18, [#allocation3]
    $region5: #{tpu_custom_call.1} parent=1 // pred_fallthru
      _
    // Predicated region
    $region6: #{tpu_custom_call.1} parent=1 // pred_check
      _
    $region7: #{tpu_custom_call.1} parent=1 // pred_check_branch
      %22 = sbr.rel (0) target = $region9
    $region8: #{tpu_custom_call.1} parent=1 // pred_region
      %s24 = ssub.s32 64, 64
      %25 = vsyncadd [#allocation6], %s24
      %s27 = sshll.u32 [#allocation5], 4
      %s28 = int_to_ptr.vmem [resolvable:$true] %s27
      %30 = dma.hbm_to_vmem [thread:$0]  %s1, 64, %s28, [#allocation6]
    $region9: #{tpu_custom_call.1} parent=1 // pred_fallthru
      _
    // Predicated region
    $region10: #{tpu_custom_call.1} parent=1 // pred_check
      _
    $region11: #{tpu_custom_call.1} parent=1 // pred_check_branch
      %32 = sbr.rel (0) target = $region13
    $region12: #{tpu_custom_call.1} parent=1 // pred_region
      _
    $region13: #{tpu_custom_call.1} parent=1 // pred_fallthru
      _
    // Predicated region
    $region14: #{tpu_custom_call.1} parent=1 // pred_check
      _
    $region15: #{tpu_custom_call.1} parent=1 // pred_check_branch
      %34 = sbr.rel (0) target = $region17
    $region16: #{tpu_custom_call.1} parent=1 // pred_region
      %35 = dma.done [#allocation3], 64
    $region17: #{tpu_custom_call.1} parent=1 // pred_fallthru
      _
    // Predicated region
    $region18: #{tpu_custom_call.1} parent=1 // pred_check
      _
    $region19: #{tpu_custom_call.1} parent=1 // pred_check_branch
      %37 = sbr.rel (0) target = $region21
    $region20: #{tpu_custom_call.1} parent=1 // pred_region
      %38 = dma.done [#allocation6], 64
    $region21: #{tpu_custom_call.1} parent=1 // pred_fallthru
      _
    %v39 = vld [vmem:[#allocation2] sm:$0xf]
    %v40 = vld [vmem:[#allocation5] sm:$0xf]
    %v41 = vmul.f32 %v39, %v40
    %v42 = vld [vmem:[%s2] sm:$0x1]
    %v44 = vlaneseq
    %v45 = vshrl.u32 %v44, 7
    %v46 = vsub.s32 0, %v45
    %v47 = vrot.slane %v42, %v46
    %v49 = vadd.f32 %v41, %v47
    %50 = vst [vmem:[#allocation7] sm:$0xf] %v49
    // Predicated region
    $region22: #{tpu_custom_call.1} parent=1 // pred_check
      _
    $region23: #{tpu_custom_call.1} parent=1 // pred_check_branch
      %52 = sbr.rel (0) target = $region25
    $region24: #{tpu_custom_call.1} parent=1 // pred_region
      %s54 = ssub.s32 64, 64
      %55 = vsyncadd [#allocation4], %s54
      %s57 = sshll.u32 [#allocation7], 4
      %s58 = int_to_ptr.vmem [resolvable:$true] %s57
      %60 = dma.vmem_to_hbm [thread:$0]  %s58, 64, %s3, [#allocation4]
    $region25: #{tpu_custom_call.1} parent=1 // pred_fallthru
      _
    // Predicated region
    $region26: #{tpu_custom_call.1} parent=1 // pred_check
      _
    $region27: #{tpu_custom_call.1} parent=1 // pred_check_branch
      %62 = sbr.rel (0) target = $region29
    $region28: #{tpu_custom_call.1} parent=1 // pred_region
      %63 = dma.done [#allocation4], 64
    $region29: #{tpu_custom_call.1} parent=1 // pred_fallthru
      _
    %64 = vsyncpa [#allocation3], 1
    %65 = vsyncpa [#allocation6], 1
    %66 = vsyncpa [#allocation4], 1

</llo_original>
